<compile_context>
chip_gen: v5e
topology: v5e:2x2
jax: 0.10.0
libtpu: 0.0.40
codegen_flags: <defaults>
</compile_context>

<pallas_src>
import functools

import jax
import jax.numpy as jnp
from jax import lax
from jax.experimental import pallas as pl
from jax.experimental.pallas import tpu as pltpu

LN_EPS = 1e-5  # PyTorch nn.LayerNorm default eps


def _round_up(x, m):
    return (x + m - 1) // m * m


def _cdiv(a, b):
    return -(-a // b)


# ----------------------------------------------------------------------------
# Kernel body: LayerNorm(patch_dim) -> Linear -> LayerNorm(dim), one token tile
# ----------------------------------------------------------------------------
def _patch_embed_kernel(x_ref, g1_ref, b1_ref, w_ref, b_ref, g2_ref, b2_ref,
                        o_ref, *, dim, matmul_dtype):
    x = x_ref[...].astype(jnp.float32)           # (tm, patch_dim), unpadded

    # --- LayerNorm over patch_dim (two-pass variance; block is unpadded so
    # jnp.mean divides by the true width) ---
    mu = jnp.mean(x, axis=-1, keepdims=True)
    xc = x - mu
    var = jnp.mean(xc * xc, axis=-1, keepdims=True)
    xn = xc * lax.rsqrt(var + LN_EPS)
    xn = xn * g1_ref[...].astype(jnp.float32) + b1_ref[...].astype(jnp.float32)

    # --- Linear(patch_dim, dim): bf16 operands -> full MXU rate, f32 acc ---
    y = jnp.dot(xn.astype(matmul_dtype), w_ref[...],
                preferred_element_type=jnp.float32)
    y = y + b_ref[...].astype(jnp.float32)       # (tm, dim_pad)

    # --- LayerNorm over dim.  y's padded lanes are exactly zero (zero W
    # columns / bias padding); statistics use the true `dim` and mask the
    # padded lanes out of the variance sum (exact two-pass) ---
    if dim == y.shape[-1]:
        mu2 = jnp.mean(y, axis=-1, keepdims=True)
        yc = y - mu2
        var2 = jnp.mean(yc * yc, axis=-1, keepdims=True)
    else:
        inv_d = 1.0 / dim
        mu2 = jnp.sum(y, axis=-1, keepdims=True) * inv_d
        yc = y - mu2
        lane = lax.broadcasted_iota(jnp.int32, y.shape, dimension=1)
        ycm = jnp.where(lane < dim, yc, 0.0)
        var2 = jnp.sum(ycm * ycm, axis=-1, keepdims=True) * inv_d
    yn = yc * lax.rsqrt(var2 + LN_EPS)
    # gamma2/beta2 are zero on padded lanes -> padded output lanes are 0.
    yn = yn * g2_ref[...].astype(jnp.float32) + b2_ref[...].astype(jnp.float32)

    o_ref[...] = yn.astype(o_ref.dtype)


# ----------------------------------------------------------------------------
# Host-side helpers
# ----------------------------------------------------------------------------
def _rearrange_patches(x, patch_height, patch_width):
    # 'b c (h p1) (w p2) -> b (h w) (p1 p2 c)'
    B, C, H, W = x.shape
    h, w = H // patch_height, W // patch_width
    x = x.reshape(B, C, h, patch_height, w, patch_width)
    x = jnp.transpose(x, (0, 2, 4, 3, 5, 1))          # (B, h, w, p1, p2, C)
    return x.reshape(B, h * w, patch_height * patch_width * C)


def _vmem_capacity_bytes():
    try:
        return int(pltpu.get_tpu_info().vmem_capacity_bytes)
    except Exception:
        return 64 * 1024 * 1024  # conservative (v7x per-TC)


def _num_tensorcores():
    """Best-effort TensorCores-per-chip (2 on v7x, 1 on v5e/v6e)."""
    try:
        info = pltpu.get_tpu_info()
        for attr in ("num_cores", "tensorcores_per_chip", "cores_per_chip",
                     "num_tensorcores", "core_count"):
            v = getattr(info, attr, None)
            if isinstance(v, int) and v > 0:
                return min(v, 2)
    except Exception:
        pass
    try:
        if "v7" in jax.devices()[0].device_kind.lower():
            return 2
    except Exception:
        pass
    return 1


def _choose_tiling(M, pdim, dim_pad, w_bytes, vmem_limit, num_cores):
    """Pick (tm, n_steps): largest MXU-aligned token tile that fits the VMEM
    budget, with >=2 pipelined steps per TensorCore when there is enough work
    (and no forced split on single-core chips)."""
    # Conservative per-row model: double-buffered in/out DMA tiles plus live
    # f32 temporaries (x, xc, xn, y, yc, yn, bf16 copy, broadcasts).
    per_row = 32 * (pdim + dim_pad)
    budget = max(per_row * 8, vmem_limit - 8 * 1024 * 1024 - w_bytes)
    cap = max(8, min(512, budget // per_row))
    cap -= cap % (256 if cap >= 256 else 8)

    min_steps = 1
    if num_cores > 1 and M >= num_cores * 256:
        min_steps = num_cores * (2 if M >= 2 * num_cores * 256 else 1)
    n_steps = max(min_steps, _cdiv(M, cap))

    tm_raw = _cdiv(M, n_steps)
    if tm_raw >= 128:
        tm = _round_up(tm_raw, 128)
        # 256-align (2x256 MXU) only when the extra padded rows are cheap.
        if tm % 256 != 0 and _round_up(tm_raw, 256) <= tm_raw * 9 // 8:
            tm = _round_up(tm_raw, 256)
    else:
        tm = _round_up(tm_raw, 8)
    return tm, n_steps


def _invariant_spec(shape):
    """BlockSpec for a grid-invariant operand: constant index_map plus
    single-buffering (never re-fetched, so a second buffer is wasted VMEM)."""
    zeros = (0,) * len(shape)
    try:
        return pl.BlockSpec(shape, lambda i: zeros,
                            pipeline_mode=pl.Buffered(1))
    except TypeError:  # older BlockSpec without pipeline_mode
        return pl.BlockSpec(shape, lambda i: zeros)


# ----------------------------------------------------------------------------
# Public forward
# ----------------------------------------------------------------------------
@functools.partial(jax.jit, static_argnames=("patch_height", "patch_width",
                                              "use_bf16_matmul"))
def patch_embedding_forward(x, params, *, patch_height, patch_width,
                            use_bf16_matmul=True):
    """x: (B, C, H, W) float32 (NCHW). Returns (B, num_patches, dim)."""
    g1, b1, wT, b, g2, b2 = params
    patch_dim, dim = wT.shape

    patches = _rearrange_patches(x, patch_height, patch_width)  # (B, N, pd)
    B, N, _ = patches.shape
    M = B * N

    dim_pad = _round_up(dim, 128)          # lane-dense output (unmasked vst)
    matmul_dtype = jnp.bfloat16 if use_bf16_matmul else jnp.float32

    vmem_limit = min(_vmem_capacity_bytes() * 3 // 4, 64 * 1024 * 1024)
    w_bytes = patch_dim * dim_pad * (2 if use_bf16_matmul else 4)
    tm, n_steps = _choose_tiling(M, patch_dim, dim_pad, w_bytes, vmem_limit,
                                 _num_tensorcores())
    M_pad = tm * n_steps

    # Tokens flattened; no lane padding of the activation (block last dim
    # equals the true patch_dim).  Row-pad only when tiling requires it.
    x2d = patches.reshape(M, patch_dim)
    if M_pad != M:
        x2d = jnp.pad(x2d, ((0, M_pad - M), (0, 0)))

    # Zero-padded W columns / bias / gamma2 / beta2 keep the padded output
    # lanes exactly zero; LN2 statistics divide by the true `dim`.
    wp = jnp.pad(wT, ((0, 0), (0, dim_pad - dim))).astype(matmul_dtype)
    g1p = g1.reshape(1, patch_dim)
    b1p = b1.reshape(1, patch_dim)
    bp = jnp.pad(b, (0, dim_pad - dim)).reshape(1, dim_pad)
    g2p = jnp.pad(g2, (0, dim_pad - dim)).reshape(1, dim_pad)
    b2p = jnp.pad(b2, (0, dim_pad - dim)).reshape(1, dim_pad)

    kernel = functools.partial(_patch_embed_kernel, dim=dim,
                               matmul_dtype=matmul_dtype)

    out2d = pl.pallas_call(
        kernel,
        out_shape=jax.ShapeDtypeStruct((M_pad, dim_pad), x.dtype),
        grid_spec=pltpu.PrefetchScalarGridSpec(
            num_scalar_prefetch=0,
            grid=(n_steps,),
            in_specs=[
                pl.BlockSpec((tm, patch_dim), lambda i: (i, 0)),  # x tile
                _invariant_spec((1, patch_dim)),                  # ln1 gamma
                _invariant_spec((1, patch_dim)),                  # ln1 beta
                _invariant_spec((patch_dim, dim_pad)),            # W^T
                _invariant_spec((1, dim_pad)),                    # linear bias
                _invariant_spec((1, dim_pad)),                    # ln2 gamma
                _invariant_spec((1, dim_pad)),                    # ln2 beta
            ],
            out_specs=pl.BlockSpec((tm, dim_pad), lambda i: (i, 0)),
        ),
        compiler_params=pltpu.CompilerParams(
            dimension_semantics=("parallel",),
            vmem_limit_bytes=int(vmem_limit),
        ),
    )(x2d, g1p, b1p, wp, bp, g2p, b2p)

    if M_pad == M and dim_pad == dim:
        return out2d.reshape(B, N, dim)     # fast path: no unpad HBM pass
    return out2d[:M, :dim].reshape(B, N, dim)


# ----------------------------------------------------------------------------
# Parameters / reference / self-test
# ----------------------------------------------------------------------------
def init_params(key, patch_dim, dim):
    """Deterministic synthetic parameters matching the PyTorch module shapes."""
    kw, kb = jax.random.split(key)
    g1 = jnp.ones((patch_dim,), jnp.float32)           # LayerNorm(patch_dim).weight
    b1 = jnp.zeros((patch_dim,), jnp.float32)          # LayerNorm(patch_dim).bias
    # nn.Linear(patch_dim, dim): weight is (dim, patch_dim); we store W^T.
    wT = jax.random.normal(kw, (patch_dim, dim), jnp.float32) * 0.02
    b = jax.random.normal(kb, (dim,), jnp.float32) * 0.02
    g2 = jnp.ones((dim,), jnp.float32)                  # LayerNorm(dim).weight
    b2 = jnp.zeros((dim,), jnp.float32)                 # LayerNorm(dim).bias
    return (g1, b1, wT, b, g2, b2)


def _reference_forward(x, params, patch_height, patch_width):
    # Pure-JAX f32 reference (two-pass variance, no padding).
    g1, b1, wT, b, g2, b2 = params
    p = _rearrange_patches(x, patch_height, patch_width)
    mu = jnp.mean(p, -1, keepdims=True)
    var = jnp.mean((p - mu) ** 2, -1, keepdims=True)
    p = (p - mu) / jnp.sqrt(var + LN_EPS) * g1 + b1
    y = p @ wT + b
    mu2 = jnp.mean(y, -1, keepdims=True)
    var2 = jnp.mean((y - mu2) ** 2, -1, keepdims=True)
    return (y - mu2) / jnp.sqrt(var2 + LN_EPS) * g2 + b2


if __name__ == "__main__":
    # Small shapes: image 16x16, patch 4x4, channels 4, dim 32.
    B, C, H, W = 2, 4, 16, 16
    PH, PW = 4, 4
    DIM = 32
    PATCH_DIM = C * PH * PW  # 64

    key = jax.random.PRNGKey(0)
    kx, kp = jax.random.split(key)
    x = jax.random.normal(kx, (B, C, H, W), jnp.float32)
    params = init_params(kp, PATCH_DIM, DIM)

    ref = _reference_forward(x, params, PH, PW)
    expected_shape = (B, (H // PH) * (W // PW), DIM)

    # Strict-f32 path (exact parity with the PyTorch f32 module).
    out_f32 = patch_embedding_forward(x, params, patch_height=PH,
                                      patch_width=PW, use_bf16_matmul=False)
    out_f32 = jax.block_until_ready(out_f32)
    assert out_f32.shape == expected_shape, out_f32.shape
    assert jnp.allclose(out_f32, ref, atol=1e-4, rtol=1e-4), "f32 mismatch"

    # Fast bf16-matmul path (default): bf16 operands, f32 accumulation.
    out_bf16 = patch_embedding_forward(x, params, patch_height=PH,
                                       patch_width=PW, use_bf16_matmul=True)
    out_bf16 = jax.block_until_ready(out_bf16)
    assert out_bf16.shape == expected_shape, out_bf16.shape
    assert jnp.allclose(out_bf16, ref, atol=5e-2, rtol=5e-2), "bf16 mismatch"

    print("KERNEL_OK")
</pallas_src>

<mosaic_0001>
module attributes {stable_mosaic.version = 11 : i64} {
  func.func @_patch_embed_kernel(%arg0: i32, %arg1: memref<32x64xf32, #tpu.memory_space<vmem>>, %arg2: memref<1x64xf32, #tpu.memory_space<vmem>>, %arg3: memref<1x64xf32, #tpu.memory_space<vmem>>, %arg4: memref<64x128xf32, #tpu.memory_space<vmem>>, %arg5: memref<1x128xf32, #tpu.memory_space<vmem>>, %arg6: memref<1x128xf32, #tpu.memory_space<vmem>>, %arg7: memref<1x128xf32, #tpu.memory_space<vmem>>, %arg8: memref<32x128xf32, #tpu.memory_space<vmem>>) attributes {dimension_semantics = [#tpu.dimension_semantics<parallel>], iteration_bounds = array<i64: 1>, scalar_prefetch = 0 : i64, scratch_operands = 0 : i64, tpu.core_type = #tpu.core_type<tc>, window_params = [{transform_indices = @transform_0, window_bounds = array<i64: 32, 64>}, {pipeline_mode = #tpu.pipeline_mode<synchronous>, transform_indices = @transform_1, window_bounds = array<i64: 1, 64>}, {pipeline_mode = #tpu.pipeline_mode<synchronous>, transform_indices = @transform_2, window_bounds = array<i64: 1, 64>}, {pipeline_mode = #tpu.pipeline_mode<synchronous>, transform_indices = @transform_3, window_bounds = array<i64: 64, 128>}, {pipeline_mode = #tpu.pipeline_mode<synchronous>, transform_indices = @transform_4, window_bounds = array<i64: 1, 128>}, {pipeline_mode = #tpu.pipeline_mode<synchronous>, transform_indices = @transform_5, window_bounds = array<i64: 1, 128>}, {pipeline_mode = #tpu.pipeline_mode<synchronous>, transform_indices = @transform_6, window_bounds = array<i64: 1, 128>}, {transform_indices = @transform_7, window_bounds = array<i64: 32, 128>}]} {
    %c0 = arith.constant 0 : index
    %c0_0 = arith.constant 0 : index
    %0 = vector.load %arg1[%c0, %c0_0] : memref<32x64xf32, #tpu.memory_space<vmem>>, vector<32x64xf32>
    %cst = arith.constant dense<0.000000e+00> : vector<32xf32>
    %1 = vector.multi_reduction <add>, %0, %cst [1] : vector<32x64xf32> to vector<32xf32>
    %2 = vector.shape_cast %1 : vector<32xf32> to vector<32x1xf32>
    %cst_1 = arith.constant 6.400000e+01 : f32
    %3 = vector.broadcast %cst_1 : f32 to vector<32x1xf32>
    %4 = arith.divf %2, %3 : vector<32x1xf32>
    %5 = vector.broadcast %4 : vector<32x1xf32> to vector<32x64xf32>
    %6 = arith.subf %0, %5 : vector<32x64xf32>
    %7 = arith.mulf %6, %6 : vector<32x64xf32>
    %cst_2 = arith.constant dense<0.000000e+00> : vector<32xf32>
    %8 = vector.multi_reduction <add>, %7, %cst_2 [1] : vector<32x64xf32> to vector<32xf32>
    %9 = vector.shape_cast %8 : vector<32xf32> to vector<32x1xf32>
    %cst_3 = arith.constant 6.400000e+01 : f32
    %10 = vector.broadcast %cst_3 : f32 to vector<32x1xf32>
    %11 = arith.divf %9, %10 : vector<32x1xf32>
    %cst_4 = arith.constant 9.99999974E-6 : f32
    %12 = vector.broadcast %cst_4 : f32 to vector<32x1xf32>
    %13 = arith.addf %11, %12 : vector<32x1xf32>
    %14 = math.rsqrt %13 : vector<32x1xf32>
    %15 = vector.broadcast %14 : vector<32x1xf32> to vector<32x64xf32>
    %16 = arith.mulf %6, %15 : vector<32x64xf32>
    %c0_5 = arith.constant 0 : index
    %c0_6 = arith.constant 0 : index
    %17 = vector.load %arg2[%c0_5, %c0_6] : memref<1x64xf32, #tpu.memory_space<vmem>>, vector<1x64xf32>
    %18 = vector.broadcast %17 : vector<1x64xf32> to vector<32x64xf32>
    %19 = arith.mulf %16, %18 : vector<32x64xf32>
    %c0_7 = arith.constant 0 : index
    %c0_8 = arith.constant 0 : index
    %20 = vector.load %arg3[%c0_7, %c0_8] : memref<1x64xf32, #tpu.memory_space<vmem>>, vector<1x64xf32>
    %21 = vector.broadcast %20 : vector<1x64xf32> to vector<32x64xf32>
    %22 = arith.addf %19, %21 : vector<32x64xf32>
    %c0_9 = arith.constant 0 : index
    %c0_10 = arith.constant 0 : index
    %23 = vector.load %arg4[%c0_9, %c0_10] : memref<64x128xf32, #tpu.memory_space<vmem>>, vector<64x128xf32>
    %cst_11 = arith.constant dense<0.000000e+00> : vector<32x128xf32>
    %24 = tpu.matmul %22, %23, %cst_11 {dimension_numbers = #tpu.dot_dimension_numbers<[1], [0], [0], [1], [0, 0, 1, 1], [], []>} : vector<32x64xf32>, vector<64x128xf32>, vector<32x128xf32> -> vector<32x128xf32>
    %c0_12 = arith.constant 0 : index
    %c0_13 = arith.constant 0 : index
    %25 = vector.load %arg5[%c0_12, %c0_13] : memref<1x128xf32, #tpu.memory_space<vmem>>, vector<1x128xf32>
    %26 = vector.broadcast %25 : vector<1x128xf32> to vector<32x128xf32>
    %27 = arith.addf %24, %26 : vector<32x128xf32>
    %cst_14 = arith.constant dense<0.000000e+00> : vector<32xf32>
    %28 = vector.multi_reduction <add>, %27, %cst_14 [1] : vector<32x128xf32> to vector<32xf32>
    %29 = vector.shape_cast %28 : vector<32xf32> to vector<32x1xf32>
    %cst_15 = arith.constant 3.125000e-02 : f32
    %30 = vector.broadcast %cst_15 : f32 to vector<32x1xf32>
    %31 = arith.mulf %29, %30 : vector<32x1xf32>
    %32 = vector.broadcast %31 : vector<32x1xf32> to vector<32x128xf32>
    %33 = arith.subf %27, %32 : vector<32x128xf32>
    %34 = tpu.iota {dimensions = array<i32: 1>} : vector<32x128xi32>
    %c32_i32 = arith.constant 32 : i32
    %35 = vector.broadcast %c32_i32 : i32 to vector<32x128xi32>
    %36 = arith.cmpi slt, %34, %35 : vector<32x128xi32>
    %cst_16 = arith.constant 0.000000e+00 : f32
    %37 = vector.broadcast %cst_16 : f32 to vector<32x128xf32>
    %38 = arith.select %36, %33, %37 : vector<32x128xi1>, vector<32x128xf32>
    %39 = arith.mulf %38, %38 : vector<32x128xf32>
    %cst_17 = arith.constant dense<0.000000e+00> : vector<32xf32>
    %40 = vector.multi_reduction <add>, %39, %cst_17 [1] : vector<32x128xf32> to vector<32xf32>
    %41 = vector.shape_cast %40 : vector<32xf32> to vector<32x1xf32>
    %cst_18 = arith.constant 3.125000e-02 : f32
    %42 = vector.broadcast %cst_18 : f32 to vector<32x1xf32>
    %43 = arith.mulf %41, %42 : vector<32x1xf32>
    %cst_19 = arith.constant 9.99999974E-6 : f32
    %44 = vector.broadcast %cst_19 : f32 to vector<32x1xf32>
    %45 = arith.addf %43, %44 : vector<32x1xf32>
    %46 = math.rsqrt %45 : vector<32x1xf32>
    %47 = vector.broadcast %46 : vector<32x1xf32> to vector<32x128xf32>
    %48 = arith.mulf %33, %47 : vector<32x128xf32>
    %c0_20 = arith.constant 0 : index
    %c0_21 = arith.constant 0 : index
    %49 = vector.load %arg6[%c0_20, %c0_21] : memref<1x128xf32, #tpu.memory_space<vmem>>, vector<1x128xf32>
    %50 = vector.broadcast %49 : vector<1x128xf32> to vector<32x128xf32>
    %51 = arith.mulf %48, %50 : vector<32x128xf32>
    %c0_22 = arith.constant 0 : index
    %c0_23 = arith.constant 0 : index
    %52 = vector.load %arg7[%c0_22, %c0_23] : memref<1x128xf32, #tpu.memory_space<vmem>>, vector<1x128xf32>
    %53 = vector.broadcast %52 : vector<1x128xf32> to vector<32x128xf32>
    %54 = arith.addf %51, %53 : vector<32x128xf32>
    %c0_24 = arith.constant 0 : index
    %c0_25 = arith.constant 0 : index
    %55 = vector.load %arg8[%c0_24, %c0_25] : memref<32x128xf32, #tpu.memory_space<vmem>>, vector<32x128xf32>
    tpu.vector_store %arg8[%c0_24, %c0_25], %54 {strides = array<i32>} : memref<32x128xf32, #tpu.memory_space<vmem>>, vector<32x128xf32>,
    return
  }
  func.func @transform_0(%arg0: i32) -> (i32, i32) {
    %c0_i32 = arith.constant 0 : i32
    %c0_i32_0 = arith.constant 0 : i32
    return %arg0, %c0_i32 : i32, i32
  }
  func.func @transform_1(%arg0: i32) -> (i32, i32) {
    %c0_i32 = arith.constant 0 : i32
    %c0_i32_0 = arith.constant 0 : i32
    %c0_i32_1 = arith.constant 0 : i32
    return %c0_i32, %c0_i32_0 : i32, i32
  }
  func.func @transform_2(%arg0: i32) -> (i32, i32) {
    %c0_i32 = arith.constant 0 : i32
    %c0_i32_0 = arith.constant 0 : i32
    %c0_i32_1 = arith.constant 0 : i32
    return %c0_i32, %c0_i32_0 : i32, i32
  }
  func.func @transform_3(%arg0: i32) -> (i32, i32) {
    %c0_i32 = arith.constant 0 : i32
    %c0_i32_0 = arith.constant 0 : i32
    %c0_i32_1 = arith.constant 0 : i32
    return %c0_i32, %c0_i32_0 : i32, i32
  }
  func.func @transform_4(%arg0: i32) -> (i32, i32) {
    %c0_i32 = arith.constant 0 : i32
    %c0_i32_0 = arith.constant 0 : i32
    %c0_i32_1 = arith.constant 0 : i32
    return %c0_i32, %c0_i32_0 : i32, i32
  }
  func.func @transform_5(%arg0: i32) -> (i32, i32) {
    %c0_i32 = arith.constant 0 : i32
    %c0_i32_0 = arith.constant 0 : i32
    %c0_i32_1 = arith.constant 0 : i32
    return %c0_i32, %c0_i32_0 : i32, i32
  }
  func.func @transform_6(%arg0: i32) -> (i32, i32) {
    %c0_i32 = arith.constant 0 : i32
    %c0_i32_0 = arith.constant 0 : i32
    %c0_i32_1 = arith.constant 0 : i32
    return %c0_i32, %c0_i32_0 : i32, i32
  }
  func.func @transform_7(%arg0: i32) -> (i32, i32) {
    %c0_i32 = arith.constant 0 : i32
    %c0_i32_0 = arith.constant 0 : i32
    return %arg0, %c0_i32 : i32, i32
  }
}

</mosaic_0001>

<llo_original>
// kernel: patch_embedding_forward.1
$region0: #{patch_embedding_forward.1}
  #allocation0 [shape = 'u32[]', space=smem, size = 0x4, offset = 0x4, fixed_abs, tag = 'smem constant byte address 0x4 - core index']
  #allocation1 [shape = 'u32[72,128]{1,0:T(1,128)}', space=vmem, size = 0x9000, scoped, tag = 'internal scratch']
  %s0 = inlined_call_operand.vmem [shape: f32[32,64], index: 0, kind: input, shape index: {}]
  %s1 = inlined_call_operand.vmem [shape: f32[1,64], index: 1, kind: input, shape index: {}]
  %s2 = inlined_call_operand.vmem [shape: f32[1,64], index: 2, kind: input, shape index: {}]
  %s3 = inlined_call_operand.vmem [shape: f32[64,128], index: 3, kind: input, shape index: {}]
  %s4 = inlined_call_operand.vmem [shape: f32[1,128], index: 4, kind: input, shape index: {}]
  %s5 = inlined_call_operand.vmem [shape: f32[1,128], index: 5, kind: input, shape index: {}]
  %s6 = inlined_call_operand.vmem [shape: f32[1,128], index: 6, kind: input, shape index: {}]
  %s7 = inlined_call_operand.hbm [shape: f32[32,128], index: 7, kind: output, shape index: {}]
  %s8 = sld [smem:[#allocation0]]
  $region38: #{patch_embedding_forward.1} parent=0
    _
  %s10 = ssub.s32 1, %s8
  %s11 = scalar_select 0, %s10, %s8
  $region1: #{patch_embedding_forward.1} parent=0
    #allocation2 [shape = 'u8[16384]{0}', space=vmem, size = 0x4000, scoped, tag = 'output window, operand 0, single buffered']
    #allocation3 [shape = 's32[1]{0}', space=sflag, size = 0x4, scoped, tag = 'scoped memory for patch_embedding_forward.1']
    %12 = vsyncpa [#allocation3], 0
    // Predicated region
    $region2: #{patch_embedding_forward.1} parent=1 // pred_check
      _
    $region3: #{patch_embedding_forward.1} parent=1 // pred_check_branch
      %14 = sbr.rel (0) target = $region5
    $region4: #{patch_embedding_forward.1} parent=1 // pred_region
      _
    $region5: #{patch_embedding_forward.1} parent=1 // pred_fallthru
      _
    // Predicated region
    $region6: #{patch_embedding_forward.1} parent=1 // pred_check
      _
    $region7: #{patch_embedding_forward.1} parent=1 // pred_check_branch
      %16 = sbr.rel (0) target = $region9
    $region8: #{patch_embedding_forward.1} parent=1 // pred_region
      _
    $region9: #{patch_embedding_forward.1} parent=1 // pred_fallthru
      _
    // Predicated region
    $region10: #{patch_embedding_forward.1} parent=1 // pred_check
      _
    $region11: #{patch_embedding_forward.1} parent=1 // pred_check_branch
      %18 = sbr.rel (0) target = $region13
    $region12: #{patch_embedding_forward.1} parent=1 // pred_region
      _
    $region13: #{patch_embedding_forward.1} parent=1 // pred_fallthru
      _
    // Predicated region
    $region14: #{patch_embedding_forward.1} parent=1 // pred_check
      _
    $region15: #{patch_embedding_forward.1} parent=1 // pred_check_branch
      %20 = sbr.rel (0) target = $region17
    $region16: #{patch_embedding_forward.1} parent=1 // pred_region
      _
    $region17: #{patch_embedding_forward.1} parent=1 // pred_fallthru
      _
    // Predicated region
    $region18: #{patch_embedding_forward.1} parent=1 // pred_check
      _
    $region19: #{patch_embedding_forward.1} parent=1 // pred_check_branch
      %22 = sbr.rel (0) target = $region21
    $region20: #{patch_embedding_forward.1} parent=1 // pred_region
      _
    $region21: #{patch_embedding_forward.1} parent=1 // pred_fallthru
      _
    // Predicated region
    $region22: #{patch_embedding_forward.1} parent=1 // pred_check
      _
    $region23: #{patch_embedding_forward.1} parent=1 // pred_check_branch
      %24 = sbr.rel (0) target = $region25
    $region24: #{patch_embedding_forward.1} parent=1 // pred_region
      _
    $region25: #{patch_embedding_forward.1} parent=1 // pred_fallthru
      _
    // Predicated region
    $region26: #{patch_embedding_forward.1} parent=1 // pred_check
      _
    $region27: #{patch_embedding_forward.1} parent=1 // pred_check_branch
      %26 = sbr.rel (0) target = $region29
    $region28: #{patch_embedding_forward.1} parent=1 // pred_region
      _
    $region29: #{patch_embedding_forward.1} parent=1 // pred_fallthru
      _
    %v27 = vld [vmem:[%s0] sm:$0xff]
    %v28 = vld [vmem:[%s0 + $0x8] sm:$0xff]
    %v29 = vld [vmem:[%s0 + $0x10] sm:$0xff]
    %v30 = vld [vmem:[%s0 + $0x18] sm:$0xff]
    %vm31 = vcmask 523264
    %v32 = vsel %vm31, %v27, 0.0
    %33 = vadd.xlane.f32.xlu0 %v32
    %v34 = vpop.xlane.xlu0 %33
    %v35 = vsel %vm31, %v28, 0.0
    %36 = vadd.xlane.f32.xlu0 %v35
    %v37 = vpop.xlane.xlu0 %36
    %v38 = vsel %vm31, %v29, 0.0
    %39 = vadd.xlane.f32.xlu0 %v38
    %v40 = vpop.xlane.xlu0 %39
    %v41 = vsel %vm31, %v30, 0.0
    %42 = vadd.xlane.f32.xlu0 %v41
    %v43 = vpop.xlane.xlu0 %42
    %v44 = vrcp.pop 64.0
    %v45 = vmul.f32 64.0, %v44
    %v46 = vsub.f32 1.0, %v45
    %v47 = vmul.f32 %v44, %v46
    %v48 = vadd.f32 %v44, %v47
    %vm49 = vweird.f32 %v44
    %v50 = vsel %vm49, %v44, %v48
    %v51 = vmul.f32 %v34, %v50
    %v52 = vmul.f32 %v37, %v50
    %v53 = vmul.f32 %v40, %v50
    %v54 = vmul.f32 %v43, %v50
    %v55 = vsub.f32 %v27, %v51
    %v56 = vsub.f32 %v28, %v52
    %v57 = vsub.f32 %v29, %v53
    %v58 = vsub.f32 %v30, %v54
    %v59 = vmul.f32 %v55, %v55
    %v60 = vmul.f32 %v56, %v56
    %v61 = vmul.f32 %v57, %v57
    %v62 = vmul.f32 %v58, %v58
    %v63 = vsel %vm31, %v59, 0.0
    %64 = vadd.xlane.f32.xlu0 %v63
    %v65 = vpop.xlane.xlu0 %64
    %v66 = vsel %vm31, %v60, 0.0
    %67 = vadd.xlane.f32.xlu0 %v66
    %v68 = vpop.xlane.xlu0 %67
    %v69 = vsel %vm31, %v61, 0.0
    %70 = vadd.xlane.f32.xlu0 %v69
    %v71 = vpop.xlane.xlu0 %70
    %v72 = vsel %vm31, %v62, 0.0
    %73 = vadd.xlane.f32.xlu0 %v72
    %v74 = vpop.xlane.xlu0 %73
    %v75 = vmul.f32 %v65, %v50
    %v76 = vmul.f32 %v68, %v50
    %v77 = vmul.f32 %v71, %v50
    %v78 = vmul.f32 %v74, %v50
    %v79 = vadd.f32 %v75, 1e-05
    %v80 = vadd.f32 %v76, 1e-05
    %v81 = vadd.f32 %v77, 1e-05
    %v82 = vadd.f32 %v78, 1e-05
    %v83 = vrsqrt.pop %v79
    %v84 = vmul.f32 %v83, %v79
    %v85 = vmul.f32 %v84, %v83
    %v86 = vmul.f32 0.5, %v85
    %v87 = vsub.f32 1.5, %v86
    %v88 = vmul.f32 %v83, %v87
    %vm89 = vweird.f32 %v79
    %vm90 = vweird.f32 %v83
    %vm91 = vmor %vm89, %vm90
    %v92 = vsel %vm91, %v83, %v88
    %v93 = vrsqrt.pop %v80
    %v94 = vmul.f32 %v93, %v80
    %v95 = vmul.f32 %v94, %v93
    %v96 = vmul.f32 0.5, %v95
    %v97 = vsub.f32 1.5, %v96
    %v98 = vmul.f32 %v93, %v97
    %vm99 = vweird.f32 %v80
    %vm100 = vweird.f32 %v93
    %vm101 = vmor %vm99, %vm100
    %v102 = vsel %vm101, %v93, %v98
    %v103 = vrsqrt.pop %v81
    %v104 = vmul.f32 %v103, %v81
    %v105 = vmul.f32 %v104, %v103
    %v106 = vmul.f32 0.5, %v105
    %v107 = vsub.f32 1.5, %v106
    %v108 = vmul.f32 %v103, %v107
    %vm109 = vweird.f32 %v81
    %vm110 = vweird.f32 %v103
    %vm111 = vmor %vm109, %vm110
    %v112 = vsel %vm111, %v103, %v108
    %v113 = vrsqrt.pop %v82
    %v114 = vmul.f32 %v113, %v82
    %v115 = vmul.f32 %v114, %v113
    %v116 = vmul.f32 0.5, %v115
    %v117 = vsub.f32 1.5, %v116
    %v118 = vmul.f32 %v113, %v117
    %vm119 = vweird.f32 %v82
    %vm120 = vweird.f32 %v113
    %vm121 = vmor %vm119, %vm120
    %v122 = vsel %vm121, %v113, %v118
    %v123 = vmul.f32 %v55, %v92
    %v124 = vmul.f32 %v56, %v102
    %v125 = vmul.f32 %v57, %v112
    %v126 = vmul.f32 %v58, %v122
    %v127 = vld [vmem:[%s1] sm:$0x1]
    %v129 = vperm.slane %v127, 0
    %v131 = vmul.f32 %v123, %v129
    %v132 = vmul.f32 %v124, %v129
    %v133 = vmul.f32 %v125, %v129
    %v134 = vmul.f32 %v126, %v129
    %v135 = vld [vmem:[%s2] sm:$0x1]
    %v137 = vperm.slane %v135, 0
    %v139 = vadd.f32 %v131, %v137
    %v140 = vadd.f32 %v132, %v137
    %v141 = vadd.f32 %v133, %v137
    %v142 = vadd.f32 %v134, %v137
    %v143 = vld [vmem:[%s3] sm:$0xff]
    %v144 = vld [vmem:[%s3 + $0x8] sm:$0xff]
    %v145 = vld [vmem:[%s3 + $0x10] sm:$0xff]
    %v146 = vld [vmem:[%s3 + $0x18] sm:$0xff]
    %v147 = vld [vmem:[%s3 + $0x20] sm:$0xff]
    %v148 = vld [vmem:[%s3 + $0x28] sm:$0xff]
    %v149 = vld [vmem:[%s3 + $0x30] sm:$0xff]
    %v150 = vld [vmem:[%s3 + $0x38] sm:$0xff]
    %v151 = vld [vmem:[%s4] sm:$0x1]
    %v153 = vperm.slane %v151, 0
    %v156 = vsel %vm31, %v139, 0
    %v159 = vsel %vm31, %v140, 0
    %v162 = vsel %vm31, %v141, 0
    %v165 = vsel %vm31, %v142, 0
    %167 = vmatpush.msra.mxu0 0.0
    %168 = vmatpush.msra.mxu0 0.0
    %169 = vmatpush.msra.mxu0 0.0
    %170 = vmatpush.msra.mxu0 0.0
    %171 = vmatpush.msra.mxu0 0.0
    %172 = vmatpush.msra.mxu0 0.0
    %173 = vmatpush.msra.mxu0 0.0
    %174 = vmatpush.msra.mxu0 0.0
    %175 = vmatpush.msra.mxu0 %v150
    %176 = vmatpush.msra.mxu0 %v149
    %177 = vmatpush.msra.mxu0 %v148
    %178 = vmatpush.msra.mxu0 %v147
    %179 = vmatpush.msra.mxu0 %v146
    %180 = vmatpush.msra.mxu0 %v145
    %181 = vmatpush.msra.mxu0 %v144
    %182 = vmatpush.msra.mxu0 %v143
    %183 = vmatmul.f32.gmra.mxu0 %v156
    %v184 = vpop.f32.mrf.mxu0
    %v185 = vadd.f32 %v153, %v184
    %186 = vmatmul.f32.gmra.mxu0 %v159
    %v187 = vpop.f32.mrf.mxu0
    %v188 = vadd.f32 %v153, %v187
    %189 = vmatmul.f32.gmra.mxu0 %v162
    %v190 = vpop.f32.mrf.mxu0
    %v191 = vadd.f32 %v153, %v190
    %192 = vmatmul.f32.gmra.mxu0 %v165
    %v193 = vpop.f32.mrf.mxu0
    %v194 = vadd.f32 %v153, %v193
    %195 = vdwg.mxu0
    %196 = vadd.xlane.f32.xlu0 %v185
    %v197 = vpop.xlane.xlu0 %196
    %198 = vadd.xlane.f32.xlu0 %v188
    %v199 = vpop.xlane.xlu0 %198
    %200 = vadd.xlane.f32.xlu0 %v191
    %v201 = vpop.xlane.xlu0 %200
    %202 = vadd.xlane.f32.xlu0 %v194
    %v203 = vpop.xlane.xlu0 %202
    %v204 = vmul.f32 %v197, 0.03125
    %v205 = vmul.f32 %v199, 0.03125
    %v206 = vmul.f32 %v201, 0.03125
    %v207 = vmul.f32 %v203, 0.03125
    %v208 = vsub.f32 %v185, %v204
    %v209 = vsub.f32 %v188, %v205
    %v210 = vsub.f32 %v191, %v206
    %v211 = vsub.f32 %v194, %v207
    %v212 = vlaneseq
    %v213 = vand.u32 %v212, 127
    %vm214 = vcmp.lt.s32.totalorder %v213, 32
    %v215 = vsel %vm214, %v208, 0.0
    %v216 = vsel %vm214, %v209, 0.0
    %v217 = vsel %vm214, %v210, 0.0
    %v218 = vsel %vm214, %v211, 0.0
    %v219 = vmul.f32 %v215, %v215
    %v220 = vmul.f32 %v216, %v216
    %v221 = vmul.f32 %v217, %v217
    %v222 = vmul.f32 %v218, %v218
    %223 = vadd.xlane.f32.xlu0 %v219
    %v224 = vpop.xlane.xlu0 %223
    %225 = vadd.xlane.f32.xlu0 %v220
    %v226 = vpop.xlane.xlu0 %225
    %227 = vadd.xlane.f32.xlu0 %v221
    %v228 = vpop.xlane.xlu0 %227
    %229 = vadd.xlane.f32.xlu0 %v222
    %v230 = vpop.xlane.xlu0 %229
    %v231 = vmul.f32 %v224, 0.03125
    %v232 = vmul.f32 %v226, 0.03125
    %v233 = vmul.f32 %v228, 0.03125
    %v234 = vmul.f32 %v230, 0.03125
    %v235 = vadd.f32 %v231, 1e-05
    %v236 = vadd.f32 %v232, 1e-05
    %v237 = vadd.f32 %v233, 1e-05
    %v238 = vadd.f32 %v234, 1e-05
    %v239 = vrsqrt.pop %v235
    %v240 = vmul.f32 %v239, %v235
    %v241 = vmul.f32 %v240, %v239
    %v242 = vmul.f32 0.5, %v241
    %v243 = vsub.f32 1.5, %v242
    %v244 = vmul.f32 %v239, %v243
    %vm245 = vweird.f32 %v235
    %vm246 = vweird.f32 %v239
    %vm247 = vmor %vm245, %vm246
    %v248 = vsel %vm247, %v239, %v244
    %v249 = vrsqrt.pop %v236
    %v250 = vmul.f32 %v249, %v236
    %v251 = vmul.f32 %v250, %v249
    %v252 = vmul.f32 0.5, %v251
    %v253 = vsub.f32 1.5, %v252
    %v254 = vmul.f32 %v249, %v253
    %vm255 = vweird.f32 %v236
    %vm256 = vweird.f32 %v249
    %vm257 = vmor %vm255, %vm256
    %v258 = vsel %vm257, %v249, %v254
    %v259 = vrsqrt.pop %v237
    %v260 = vmul.f32 %v259, %v237
    %v261 = vmul.f32 %v260, %v259
    %v262 = vmul.f32 0.5, %v261
    %v263 = vsub.f32 1.5, %v262
    %v264 = vmul.f32 %v259, %v263
    %vm265 = vweird.f32 %v237
    %vm266 = vweird.f32 %v259
    %vm267 = vmor %vm265, %vm266
    %v268 = vsel %vm267, %v259, %v264
    %v269 = vrsqrt.pop %v238
    %v270 = vmul.f32 %v269, %v238
    %v271 = vmul.f32 %v270, %v269
    %v272 = vmul.f32 0.5, %v271
    %v273 = vsub.f32 1.5, %v272
    %v274 = vmul.f32 %v269, %v273
    %vm275 = vweird.f32 %v238
    %vm276 = vweird.f32 %v269
    %vm277 = vmor %vm275, %vm276
    %v278 = vsel %vm277, %v269, %v274
    %v279 = vmul.f32 %v208, %v248
    %v280 = vmul.f32 %v209, %v258
    %v281 = vmul.f32 %v210, %v268
    %v282 = vmul.f32 %v211, %v278
    %v283 = vld [vmem:[%s5] sm:$0x1]
    %v285 = vperm.slane %v283, 0
    %v287 = vmul.f32 %v279, %v285
    %v288 = vmul.f32 %v280, %v285
    %v289 = vmul.f32 %v281, %v285
    %v290 = vmul.f32 %v282, %v285
    %v291 = vld [vmem:[%s6] sm:$0x1]
    %v293 = vperm.slane %v291, 0
    %v295 = vadd.f32 %v287, %v293
    %v296 = vadd.f32 %v288, %v293
    %v297 = vadd.f32 %v289, %v293
    %v298 = vadd.f32 %v290, %v293
    %299 = vst [vmem:[#allocation2] sm:$0xff] %v295
    %300 = vst [vmem:[#allocation2 + $0x8] sm:$0xff] %v296
    %301 = vst [vmem:[#allocation2 + $0x10] sm:$0xff] %v297
    %302 = vst [vmem:[#allocation2 + $0x18] sm:$0xff] %v298
    // Predicated region
    $region30: #{patch_embedding_forward.1} parent=1 // pred_check
      _
    $region31: #{patch_embedding_forward.1} parent=1 // pred_check_branch
      %304 = sbr.rel (0) target = $region33
    $region32: #{patch_embedding_forward.1} parent=1 // pred_region
      %306 = vsyncadd [#allocation3], 0
      %s307 = sshll.u32 [#allocation2], 4
      %s308 = int_to_ptr.vmem [resolvable:$true] %s307
      %s309 = sshll.u32 %s7, 4
      %s310 = int_to_ptr.hbm [resolvable:$true] %s309
      %315 = dma.vmem_to_hbm [thread:$0]  %s308, 512, %s310, [#allocation3], 128, 128, 8
    $region33: #{patch_embedding_forward.1} parent=1 // pred_fallthru
      _
    // Predicated region
    $region34: #{patch_embedding_forward.1} parent=1 // pred_check
      _
    $region35: #{patch_embedding_forward.1} parent=1 // pred_check_branch
      %317 = sbr.rel (0) target = $region37
    $region36: #{patch_embedding_forward.1} parent=1 // pred_region
      %319 = dma.done [#allocation3], 512
    $region37: #{patch_embedding_forward.1} parent=1 // pred_fallthru
      _
    %320 = vsyncpa [#allocation3], 1

</llo_original>
